<compile_context>
chip_gen: v7x
topology: tpu7x:2x2x1
jax: 0.10.0
libtpu: 0.0.40
codegen_flags: <defaults>
</compile_context>

<pallas_src>
import math
import jax
import jax.numpy as jnp
from jax.experimental import pallas as pl
from jax.experimental.pallas import tpu as pltpu

_NEG_SLOPE = 0.01          # PyTorch nn.LeakyReLU default negative slope
_SMALL_C_MAX = 8           # <= 8 channels -> VPU scalar-MAC path (MXU <4% full)
_TARGET_TILE_BYTES = 2 << 20   # ~2 MiB activation tile (~85%+ of HBM roofline)


def _round_up(x, m):
    return ((x + m - 1) // m) * m


def _cdiv(a, b):
    return (a + b - 1) // b


def _vmem_capacity_bytes():
    # v5e/v6e: 128 MiB, v7x: 64 MiB per TensorCore. Conservative fallback.
    try:
        return int(pltpu.get_tpu_info().vmem_capacity_bytes)
    except Exception:
        return 64 << 20


# ---------------------------------------------------------------------------
# Small-C path (C <= 8): scalar-weight x full-tile VPU MACs, weights in SMEM.
# Activation layout (N, C, P, 128): channel is an outer block dim, so each
# channel's (tp, 128) pixel plane maps onto dense (8,128) vregs.
# ---------------------------------------------------------------------------
def _make_small_c_kernel(C):
    def kernel(w_ref, b_ref, x_ref, o_ref):
        # w_ref: SMEM (3*C*C,) f32   b_ref: SMEM (3*C,) f32
        # x_ref / o_ref: VMEM (1, C, tp, 128) f32
        h = [x_ref[0, i] for i in range(C)]          # C planes of (tp, 128)
        for k in range(3):
            nxt = []
            for o in range(C):
                base = k * C * C + o * C
                acc = h[0] * w_ref[base]             # scalar x full tile (VPU)
                for i in range(1, C):
                    acc = acc + h[i] * w_ref[base + i]
                acc = acc + b_ref[k * C + o]         # scalar bias
                if k < 2:
                    acc = jnp.maximum(acc, _NEG_SLOPE * acc)   # LeakyReLU, 2 ops
                nxt.append(acc)
            h = nxt
        for o in range(C):
            o_ref[0, o] = h[o].astype(o_ref.dtype)
    return kernel


def _small_c_forward(x3, w_all, b_all, N, C, HW):
    HW_pad = _round_up(HW, 128)
    if HW_pad != HW:
        # TODO(synk): fold this pad into the producer; only hit when H*W % 128 != 0.
        x3 = jnp.pad(x3, ((0, 0), (0, 0), (0, HW_pad - HW)))
    P = HW_pad // 128
    x4 = x3.reshape(N, C, P, 128)                    # free, contiguous reshape

    cap = _vmem_capacity_bytes()
    budget = int(cap * 0.6)                          # 2 x (in + out) double buffers
    row_bytes = C * 128 * 4                          # one 128-pixel row, all channels
    tile_bytes = max(row_bytes * 8, min(_TARGET_TILE_BYTES, budget // 4))
    tp = max(8, (tile_bytes // row_bytes) // 8 * 8)
    if P <= 8:
        tp = P                                       # block dim == full dim (layout rule)
    else:
        tp = min(tp, (P // 8) * 8)
    nt = _cdiv(P, tp)

    # v7x: keep both TensorCores busy when a single tile would cover the image.
    if N * nt < 2 and P >= 16:
        tp = _round_up(_cdiv(P, 2), 8)
        nt = _cdiv(P, tp)

    w_flat = w_all.reshape(-1)                       # (3*C*C,)
    b_flat = b_all.reshape(-1)                       # (3*C,)

    act_spec = pl.BlockSpec((1, C, tp, 128), lambda n, j: (n, 0, j, 0))
    smem_spec = pl.BlockSpec(memory_space=pltpu.MemorySpace.SMEM)

    need = 4 * (C * tp * 128 * 4) + (1 << 20)
    vmem_limit = int(min(cap, max(need, 16 << 20)))

    out4 = pl.pallas_call(
        _make_small_c_kernel(C),
        out_shape=jax.ShapeDtypeStruct((N, C, P, 128), x4.dtype),
        grid=(N, nt),
        in_specs=[smem_spec, smem_spec, act_spec],
        out_specs=act_spec,
        compiler_params=pltpu.CompilerParams(
            dimension_semantics=("parallel", "parallel"),
            vmem_limit_bytes=vmem_limit,
        ),
    )(w_flat, b_flat, x4)

    out3 = out4.reshape(N, C, HW_pad)
    if HW_pad != HW:
        out3 = out3[:, :, :HW]
    return out3


# ---------------------------------------------------------------------------
# Large-C path (C > 8): fused MXU matmul chain on (1, C, t) tiles.
# ---------------------------------------------------------------------------
def _make_matmul_kernel(matmul_dtype):
    def kernel(x_ref, w_ref, b_ref, o_ref):
        # x_ref: (1, C, t)   w_ref: (3, C, C)   b_ref: (3, C, 1)   o_ref: (1, C, t)
        h = x_ref[0]
        for k in range(3):
            w = w_ref[k]
            if matmul_dtype is not None:   # bf16 MXU on v6e/v7x, f32 accumulate
                z = jnp.dot(w.astype(matmul_dtype), h.astype(matmul_dtype),
                            preferred_element_type=jnp.float32)
            else:
                # TODO(synk): for best v5e MXU utilisation, zero-pad C to 128.
                z = jnp.dot(w, h, preferred_element_type=jnp.float32)
            z = z + b_ref[k]
            if k < 2:
                z = jnp.maximum(z, _NEG_SLOPE * z)
            h = z
        o_ref[0] = h.astype(o_ref.dtype)
    return kernel


def _matmul_forward(x3, w_all, b_all, N, C, HW, matmul_dtype):
    HW_pad = _round_up(HW, 128)
    if HW_pad != HW:
        x3 = jnp.pad(x3, ((0, 0), (0, 0), (0, HW_pad - HW)))

    cap = _vmem_capacity_bytes()
    w_bytes = (3 * C * C + 3 * C) * 4
    # Weights/bias are grid-invariant but budgeted as double-buffered to be safe.
    # TODO(synk): pipeline_mode=pl.Buffered(1) on the weight spec would halve that.
    budget = max(int(cap * 0.6) - 2 * w_bytes, 8 * C * 128 * 4)
    tile_bytes = max(C * 128 * 4, min(_TARGET_TILE_BYTES, budget // 4))
    t = max(128, (tile_bytes // (C * 4)) // 128 * 128)
    t = min(t, HW_pad)
    nt = _cdiv(HW_pad, t)
    if N * nt < 2 and HW_pad >= 256:                 # v7x dual-TC: >= 2 grid steps
        t = _round_up(_cdiv(HW_pad, 2), 128)
        nt = _cdiv(HW_pad, t)

    act_spec = pl.BlockSpec((1, C, t), lambda n, j: (n, 0, j))
    w_spec = pl.BlockSpec((3, C, C), lambda n, j: (0, 0, 0))
    b_spec = pl.BlockSpec((3, C, 1), lambda n, j: (0, 0, 0))

    need = 4 * (C * t * 4) + 2 * w_bytes + (2 << 20)
    vmem_limit = int(min(cap, max(need, 32 << 20)))

    out3 = pl.pallas_call(
        _make_matmul_kernel(matmul_dtype),
        out_shape=jax.ShapeDtypeStruct((N, C, HW_pad), x3.dtype),
        grid=(N, nt),
        in_specs=[act_spec, w_spec, b_spec],
        out_specs=act_spec,
        compiler_params=pltpu.CompilerParams(
            dimension_semantics=("parallel", "parallel"),
            vmem_limit_bytes=vmem_limit,
        ),
    )(x3, w_all, b_all)

    if HW_pad != HW:
        out3 = out3[:, :, :HW]
    return out3


# ---------------------------------------------------------------------------
# Public entry point
# ---------------------------------------------------------------------------
def entropy_parameters_net(x_nchw, params, *, matmul_dtype=None):
    """x_nchw: (N, C, H, W) f32.  params: w1..w3 (Cout, Cin), b1..b3 (C,)."""
    N, C, H, W = x_nchw.shape
    HW = H * W
    x3 = x_nchw.reshape(N, C, HW)                    # free reshape: pixels on lanes

    w_all = jnp.stack([params["w1"], params["w2"], params["w3"]])            # (3, C, C)
    b_all = jnp.stack([params["b1"], params["b2"], params["b3"]]).reshape(3, C, 1)

    if C <= _SMALL_C_MAX:
        out3 = _small_c_forward(x3, w_all, b_all, N, C, HW)
    else:
        out3 = _matmul_forward(x3, w_all, b_all, N, C, HW, matmul_dtype)
    return out3.reshape(N, C, H, W)


# ---------------------------------------------------------------------------
# Init (matches torch xavier_normal_(gain=sqrt(2)) + constant bias 0.01) & ref
# ---------------------------------------------------------------------------
def _xavier_normal(key, c_out, c_in, gain):
    # torch.nn.init.xavier_normal_ on a (c_out, c_in, 1, 1) conv weight:
    # std = gain * sqrt(2 / (fan_in + fan_out)), fan_in = c_in, fan_out = c_out.
    std = gain * math.sqrt(2.0 / (c_in + c_out))
    return std * jax.random.normal(key, (c_out, c_in), dtype=jnp.float32)


def init_params(key, channel):
    k1, k2, k3 = jax.random.split(key, 3)
    gain = math.sqrt(2.0)
    return {
        "w1": _xavier_normal(k1, channel, channel, gain),
        "b1": jnp.full((channel,), 0.01, dtype=jnp.float32),
        "w2": _xavier_normal(k2, channel, channel, gain),
        "b2": jnp.full((channel,), 0.01, dtype=jnp.float32),
        "w3": _xavier_normal(k3, channel, channel, gain),
        "b3": jnp.full((channel,), 0.01, dtype=jnp.float32),
    }


def _reference(x_nchw, params):
    # Pure-JAX reference of the same forward pass (1x1 convs as per-pixel matmul).
    def conv1x1(x, w, b):
        return jnp.einsum("nchw,oc->nohw", x, w) + b[None, :, None, None]

    h = conv1x1(x_nchw, params["w1"], params["b1"])
    h = jnp.where(h > 0, h, _NEG_SLOPE * h)
    h = conv1x1(h, params["w2"], params["b2"])
    h = jnp.where(h > 0, h, _NEG_SLOPE * h)
    return conv1x1(h, params["w3"], params["b3"])


if __name__ == "__main__":
    key = jax.random.PRNGKey(0)
    k_x, k_p = jax.random.split(key)

    N, C, H, W = 2, 4, 16, 16
    x = jax.random.normal(k_x, (N, C, H, W), dtype=jnp.float32)
    params = init_params(k_p, C)

    out = jax.block_until_ready(entropy_parameters_net(x, params))

    ref = _reference(x, params)
    assert out.shape == (N, C, H, W)
    assert jnp.allclose(out, ref, atol=1e-5, rtol=1e-5)

    print("KERNEL_OK")
</pallas_src>

<mosaic_0001>
module attributes {stable_mosaic.version = 11 : i64} {
  func.func @kernel(%arg0: i32, %arg1: i32, %arg2: memref<48xf32, #tpu.memory_space<smem>>, %arg3: memref<12xf32, #tpu.memory_space<smem>>, %arg4: memref<1x4x2x128xf32, #tpu.memory_space<vmem>>, %arg5: memref<1x4x2x128xf32, #tpu.memory_space<vmem>>) attributes {dimension_semantics = [#tpu.dimension_semantics<parallel>, #tpu.dimension_semantics<parallel>], iteration_bounds = array<i64: 2, 1>, scalar_prefetch = 0 : i64, scratch_operands = 0 : i64, tpu.core_type = #tpu.core_type<tc>, window_params = [{transform_indices = @transform_0, window_bounds = array<i64: 48>}, {transform_indices = @transform_1, window_bounds = array<i64: 12>}, {transform_indices = @transform_2, window_bounds = array<i64: 1, 4, 2, 128>}, {transform_indices = @transform_3, window_bounds = array<i64: 1, 4, 2, 128>}]} {
    %c0 = arith.constant 0 : index
    %c0_0 = arith.constant 0 : index
    %c0_1 = arith.constant 0 : index
    %c0_2 = arith.constant 0 : index
    %0 = vector.load %arg4[%c0, %c0_0, %c0_1, %c0_2] : memref<1x4x2x128xf32, #tpu.memory_space<vmem>>, vector<1x1x2x128xf32>
    %1 = vector.shape_cast %0 : vector<1x1x2x128xf32> to vector<2x128xf32>
    %c0_3 = arith.constant 0 : index
    %c1 = arith.constant 1 : index
    %c0_4 = arith.constant 0 : index
    %c0_5 = arith.constant 0 : index
    %2 = vector.load %arg4[%c0_3, %c1, %c0_4, %c0_5] : memref<1x4x2x128xf32, #tpu.memory_space<vmem>>, vector<1x1x2x128xf32>
    %3 = vector.shape_cast %2 : vector<1x1x2x128xf32> to vector<2x128xf32>
    %c0_6 = arith.constant 0 : index
    %c2 = arith.constant 2 : index
    %c0_7 = arith.constant 0 : index
    %c0_8 = arith.constant 0 : index
    %4 = vector.load %arg4[%c0_6, %c2, %c0_7, %c0_8] : memref<1x4x2x128xf32, #tpu.memory_space<vmem>>, vector<1x1x2x128xf32>
    %5 = vector.shape_cast %4 : vector<1x1x2x128xf32> to vector<2x128xf32>
    %c0_9 = arith.constant 0 : index
    %c3 = arith.constant 3 : index
    %c0_10 = arith.constant 0 : index
    %c0_11 = arith.constant 0 : index
    %6 = vector.load %arg4[%c0_9, %c3, %c0_10, %c0_11] : memref<1x4x2x128xf32, #tpu.memory_space<vmem>>, vector<1x1x2x128xf32>
    %7 = vector.shape_cast %6 : vector<1x1x2x128xf32> to vector<2x128xf32>
    %c0_12 = arith.constant 0 : index
    %8 = memref.load %arg2[%c0_12] : memref<48xf32, #tpu.memory_space<smem>>
    %9 = vector.broadcast %8 : f32 to vector<2x128xf32>
    %10 = arith.mulf %1, %9 : vector<2x128xf32>
    %c1_13 = arith.constant 1 : index
    %11 = memref.load %arg2[%c1_13] : memref<48xf32, #tpu.memory_space<smem>>
    %12 = vector.broadcast %11 : f32 to vector<2x128xf32>
    %13 = arith.mulf %3, %12 : vector<2x128xf32>
    %14 = arith.addf %10, %13 : vector<2x128xf32>
    %c2_14 = arith.constant 2 : index
    %15 = memref.load %arg2[%c2_14] : memref<48xf32, #tpu.memory_space<smem>>
    %16 = vector.broadcast %15 : f32 to vector<2x128xf32>
    %17 = arith.mulf %5, %16 : vector<2x128xf32>
    %18 = arith.addf %14, %17 : vector<2x128xf32>
    %c3_15 = arith.constant 3 : index
    %19 = memref.load %arg2[%c3_15] : memref<48xf32, #tpu.memory_space<smem>>
    %20 = vector.broadcast %19 : f32 to vector<2x128xf32>
    %21 = arith.mulf %7, %20 : vector<2x128xf32>
    %22 = arith.addf %18, %21 : vector<2x128xf32>
    %c0_16 = arith.constant 0 : index
    %23 = memref.load %arg3[%c0_16] : memref<12xf32, #tpu.memory_space<smem>>
    %24 = vector.broadcast %23 : f32 to vector<2x128xf32>
    %25 = arith.addf %22, %24 : vector<2x128xf32>
    %cst = arith.constant 0.00999999977 : f32
    %26 = vector.broadcast %cst : f32 to vector<2x128xf32>
    %27 = arith.mulf %26, %25 : vector<2x128xf32>
    %28 = arith.maximumf %25, %27 : vector<2x128xf32>
    %c4 = arith.constant 4 : index
    %29 = memref.load %arg2[%c4] : memref<48xf32, #tpu.memory_space<smem>>
    %30 = vector.broadcast %29 : f32 to vector<2x128xf32>
    %31 = arith.mulf %1, %30 : vector<2x128xf32>
    %c5 = arith.constant 5 : index
    %32 = memref.load %arg2[%c5] : memref<48xf32, #tpu.memory_space<smem>>
    %33 = vector.broadcast %32 : f32 to vector<2x128xf32>
    %34 = arith.mulf %3, %33 : vector<2x128xf32>
    %35 = arith.addf %31, %34 : vector<2x128xf32>
    %c6 = arith.constant 6 : index
    %36 = memref.load %arg2[%c6] : memref<48xf32, #tpu.memory_space<smem>>
    %37 = vector.broadcast %36 : f32 to vector<2x128xf32>
    %38 = arith.mulf %5, %37 : vector<2x128xf32>
    %39 = arith.addf %35, %38 : vector<2x128xf32>
    %c7 = arith.constant 7 : index
    %40 = memref.load %arg2[%c7] : memref<48xf32, #tpu.memory_space<smem>>
    %41 = vector.broadcast %40 : f32 to vector<2x128xf32>
    %42 = arith.mulf %7, %41 : vector<2x128xf32>
    %43 = arith.addf %39, %42 : vector<2x128xf32>
    %c1_17 = arith.constant 1 : index
    %44 = memref.load %arg3[%c1_17] : memref<12xf32, #tpu.memory_space<smem>>
    %45 = vector.broadcast %44 : f32 to vector<2x128xf32>
    %46 = arith.addf %43, %45 : vector<2x128xf32>
    %cst_18 = arith.constant 0.00999999977 : f32
    %47 = vector.broadcast %cst_18 : f32 to vector<2x128xf32>
    %48 = arith.mulf %47, %46 : vector<2x128xf32>
    %49 = arith.maximumf %46, %48 : vector<2x128xf32>
    %c8 = arith.constant 8 : index
    %50 = memref.load %arg2[%c8] : memref<48xf32, #tpu.memory_space<smem>>
    %51 = vector.broadcast %50 : f32 to vector<2x128xf32>
    %52 = arith.mulf %1, %51 : vector<2x128xf32>
    %c9 = arith.constant 9 : index
    %53 = memref.load %arg2[%c9] : memref<48xf32, #tpu.memory_space<smem>>
    %54 = vector.broadcast %53 : f32 to vector<2x128xf32>
    %55 = arith.mulf %3, %54 : vector<2x128xf32>
    %56 = arith.addf %52, %55 : vector<2x128xf32>
    %c10 = arith.constant 10 : index
    %57 = memref.load %arg2[%c10] : memref<48xf32, #tpu.memory_space<smem>>
    %58 = vector.broadcast %57 : f32 to vector<2x128xf32>
    %59 = arith.mulf %5, %58 : vector<2x128xf32>
    %60 = arith.addf %56, %59 : vector<2x128xf32>
    %c11 = arith.constant 11 : index
    %61 = memref.load %arg2[%c11] : memref<48xf32, #tpu.memory_space<smem>>
    %62 = vector.broadcast %61 : f32 to vector<2x128xf32>
    %63 = arith.mulf %7, %62 : vector<2x128xf32>
    %64 = arith.addf %60, %63 : vector<2x128xf32>
    %c2_19 = arith.constant 2 : index
    %65 = memref.load %arg3[%c2_19] : memref<12xf32, #tpu.memory_space<smem>>
    %66 = vector.broadcast %65 : f32 to vector<2x128xf32>
    %67 = arith.addf %64, %66 : vector<2x128xf32>
    %cst_20 = arith.constant 0.00999999977 : f32
    %68 = vector.broadcast %cst_20 : f32 to vector<2x128xf32>
    %69 = arith.mulf %68, %67 : vector<2x128xf32>
    %70 = arith.maximumf %67, %69 : vector<2x128xf32>
    %c12 = arith.constant 12 : index
    %71 = memref.load %arg2[%c12] : memref<48xf32, #tpu.memory_space<smem>>
    %72 = vector.broadcast %71 : f32 to vector<2x128xf32>
    %73 = arith.mulf %1, %72 : vector<2x128xf32>
    %c13 = arith.constant 13 : index
    %74 = memref.load %arg2[%c13] : memref<48xf32, #tpu.memory_space<smem>>
    %75 = vector.broadcast %74 : f32 to vector<2x128xf32>
    %76 = arith.mulf %3, %75 : vector<2x128xf32>
    %77 = arith.addf %73, %76 : vector<2x128xf32>
    %c14 = arith.constant 14 : index
    %78 = memref.load %arg2[%c14] : memref<48xf32, #tpu.memory_space<smem>>
    %79 = vector.broadcast %78 : f32 to vector<2x128xf32>
    %80 = arith.mulf %5, %79 : vector<2x128xf32>
    %81 = arith.addf %77, %80 : vector<2x128xf32>
    %c15 = arith.constant 15 : index
    %82 = memref.load %arg2[%c15] : memref<48xf32, #tpu.memory_space<smem>>
    %83 = vector.broadcast %82 : f32 to vector<2x128xf32>
    %84 = arith.mulf %7, %83 : vector<2x128xf32>
    %85 = arith.addf %81, %84 : vector<2x128xf32>
    %c3_21 = arith.constant 3 : index
    %86 = memref.load %arg3[%c3_21] : memref<12xf32, #tpu.memory_space<smem>>
    %87 = vector.broadcast %86 : f32 to vector<2x128xf32>
    %88 = arith.addf %85, %87 : vector<2x128xf32>
    %cst_22 = arith.constant 0.00999999977 : f32
    %89 = vector.broadcast %cst_22 : f32 to vector<2x128xf32>
    %90 = arith.mulf %89, %88 : vector<2x128xf32>
    %91 = arith.maximumf %88, %90 : vector<2x128xf32>
    %c16 = arith.constant 16 : index
    %92 = memref.load %arg2[%c16] : memref<48xf32, #tpu.memory_space<smem>>
    %93 = vector.broadcast %92 : f32 to vector<2x128xf32>
    %94 = arith.mulf %28, %93 : vector<2x128xf32>
    %c17 = arith.constant 17 : index
    %95 = memref.load %arg2[%c17] : memref<48xf32, #tpu.memory_space<smem>>
    %96 = vector.broadcast %95 : f32 to vector<2x128xf32>
    %97 = arith.mulf %49, %96 : vector<2x128xf32>
    %98 = arith.addf %94, %97 : vector<2x128xf32>
    %c18 = arith.constant 18 : index
    %99 = memref.load %arg2[%c18] : memref<48xf32, #tpu.memory_space<smem>>
    %100 = vector.broadcast %99 : f32 to vector<2x128xf32>
    %101 = arith.mulf %70, %100 : vector<2x128xf32>
    %102 = arith.addf %98, %101 : vector<2x128xf32>
    %c19 = arith.constant 19 : index
    %103 = memref.load %arg2[%c19] : memref<48xf32, #tpu.memory_space<smem>>
    %104 = vector.broadcast %103 : f32 to vector<2x128xf32>
    %105 = arith.mulf %91, %104 : vector<2x128xf32>
    %106 = arith.addf %102, %105 : vector<2x128xf32>
    %c4_23 = arith.constant 4 : index
    %107 = memref.load %arg3[%c4_23] : memref<12xf32, #tpu.memory_space<smem>>
    %108 = vector.broadcast %107 : f32 to vector<2x128xf32>
    %109 = arith.addf %106, %108 : vector<2x128xf32>
    %cst_24 = arith.constant 0.00999999977 : f32
    %110 = vector.broadcast %cst_24 : f32 to vector<2x128xf32>
    %111 = arith.mulf %110, %109 : vector<2x128xf32>
    %112 = arith.maximumf %109, %111 : vector<2x128xf32>
    %c20 = arith.constant 20 : index
    %113 = memref.load %arg2[%c20] : memref<48xf32, #tpu.memory_space<smem>>
    %114 = vector.broadcast %113 : f32 to vector<2x128xf32>
    %115 = arith.mulf %28, %114 : vector<2x128xf32>
    %c21 = arith.constant 21 : index
    %116 = memref.load %arg2[%c21] : memref<48xf32, #tpu.memory_space<smem>>
    %117 = vector.broadcast %116 : f32 to vector<2x128xf32>
    %118 = arith.mulf %49, %117 : vector<2x128xf32>
    %119 = arith.addf %115, %118 : vector<2x128xf32>
    %c22 = arith.constant 22 : index
    %120 = memref.load %arg2[%c22] : memref<48xf32, #tpu.memory_space<smem>>
    %121 = vector.broadcast %120 : f32 to vector<2x128xf32>
    %122 = arith.mulf %70, %121 : vector<2x128xf32>
    %123 = arith.addf %119, %122 : vector<2x128xf32>
    %c23 = arith.constant 23 : index
    %124 = memref.load %arg2[%c23] : memref<48xf32, #tpu.memory_space<smem>>
    %125 = vector.broadcast %124 : f32 to vector<2x128xf32>
    %126 = arith.mulf %91, %125 : vector<2x128xf32>
    %127 = arith.addf %123, %126 : vector<2x128xf32>
    %c5_25 = arith.constant 5 : index
    %128 = memref.load %arg3[%c5_25] : memref<12xf32, #tpu.memory_space<smem>>
    %129 = vector.broadcast %128 : f32 to vector<2x128xf32>
    %130 = arith.addf %127, %129 : vector<2x128xf32>
    %cst_26 = arith.constant 0.00999999977 : f32
    %131 = vector.broadcast %cst_26 : f32 to vector<2x128xf32>
    %132 = arith.mulf %131, %130 : vector<2x128xf32>
    %133 = arith.maximumf %130, %132 : vector<2x128xf32>
    %c24 = arith.constant 24 : index
    %134 = memref.load %arg2[%c24] : memref<48xf32, #tpu.memory_space<smem>>
    %135 = vector.broadcast %134 : f32 to vector<2x128xf32>
    %136 = arith.mulf %28, %135 : vector<2x128xf32>
    %c25 = arith.constant 25 : index
    %137 = memref.load %arg2[%c25] : memref<48xf32, #tpu.memory_space<smem>>
    %138 = vector.broadcast %137 : f32 to vector<2x128xf32>
    %139 = arith.mulf %49, %138 : vector<2x128xf32>
    %140 = arith.addf %136, %139 : vector<2x128xf32>
    %c26 = arith.constant 26 : index
    %141 = memref.load %arg2[%c26] : memref<48xf32, #tpu.memory_space<smem>>
    %142 = vector.broadcast %141 : f32 to vector<2x128xf32>
    %143 = arith.mulf %70, %142 : vector<2x128xf32>
    %144 = arith.addf %140, %143 : vector<2x128xf32>
    %c27 = arith.constant 27 : index
    %145 = memref.load %arg2[%c27] : memref<48xf32, #tpu.memory_space<smem>>
    %146 = vector.broadcast %145 : f32 to vector<2x128xf32>
    %147 = arith.mulf %91, %146 : vector<2x128xf32>
    %148 = arith.addf %144, %147 : vector<2x128xf32>
    %c6_27 = arith.constant 6 : index
    %149 = memref.load %arg3[%c6_27] : memref<12xf32, #tpu.memory_space<smem>>
    %150 = vector.broadcast %149 : f32 to vector<2x128xf32>
    %151 = arith.addf %148, %150 : vector<2x128xf32>
    %cst_28 = arith.constant 0.00999999977 : f32
    %152 = vector.broadcast %cst_28 : f32 to vector<2x128xf32>
    %153 = arith.mulf %152, %151 : vector<2x128xf32>
    %154 = arith.maximumf %151, %153 : vector<2x128xf32>
    %c28 = arith.constant 28 : index
    %155 = memref.load %arg2[%c28] : memref<48xf32, #tpu.memory_space<smem>>
    %156 = vector.broadcast %155 : f32 to vector<2x128xf32>
    %157 = arith.mulf %28, %156 : vector<2x128xf32>
    %c29 = arith.constant 29 : index
    %158 = memref.load %arg2[%c29] : memref<48xf32, #tpu.memory_space<smem>>
    %159 = vector.broadcast %158 : f32 to vector<2x128xf32>
    %160 = arith.mulf %49, %159 : vector<2x128xf32>
    %161 = arith.addf %157, %160 : vector<2x128xf32>
    %c30 = arith.constant 30 : index
    %162 = memref.load %arg2[%c30] : memref<48xf32, #tpu.memory_space<smem>>
    %163 = vector.broadcast %162 : f32 to vector<2x128xf32>
    %164 = arith.mulf %70, %163 : vector<2x128xf32>
    %165 = arith.addf %161, %164 : vector<2x128xf32>
    %c31 = arith.constant 31 : index
    %166 = memref.load %arg2[%c31] : memref<48xf32, #tpu.memory_space<smem>>
    %167 = vector.broadcast %166 : f32 to vector<2x128xf32>
    %168 = arith.mulf %91, %167 : vector<2x128xf32>
    %169 = arith.addf %165, %168 : vector<2x128xf32>
    %c7_29 = arith.constant 7 : index
    %170 = memref.load %arg3[%c7_29] : memref<12xf32, #tpu.memory_space<smem>>
    %171 = vector.broadcast %170 : f32 to vector<2x128xf32>
    %172 = arith.addf %169, %171 : vector<2x128xf32>
    %cst_30 = arith.constant 0.00999999977 : f32
    %173 = vector.broadcast %cst_30 : f32 to vector<2x128xf32>
    %174 = arith.mulf %173, %172 : vector<2x128xf32>
    %175 = arith.maximumf %172, %174 : vector<2x128xf32>
    %c32 = arith.constant 32 : index
    %176 = memref.load %arg2[%c32] : memref<48xf32, #tpu.memory_space<smem>>
    %177 = vector.broadcast %176 : f32 to vector<2x128xf32>
    %178 = arith.mulf %112, %177 : vector<2x128xf32>
    %c33 = arith.constant 33 : index
    %179 = memref.load %arg2[%c33] : memref<48xf32, #tpu.memory_space<smem>>
    %180 = vector.broadcast %179 : f32 to vector<2x128xf32>
    %181 = arith.mulf %133, %180 : vector<2x128xf32>
    %182 = arith.addf %178, %181 : vector<2x128xf32>
    %c34 = arith.constant 34 : index
    %183 = memref.load %arg2[%c34] : memref<48xf32, #tpu.memory_space<smem>>
    %184 = vector.broadcast %183 : f32 to vector<2x128xf32>
    %185 = arith.mulf %154, %184 : vector<2x128xf32>
    %186 = arith.addf %182, %185 : vector<2x128xf32>
    %c35 = arith.constant 35 : index
    %187 = memref.load %arg2[%c35] : memref<48xf32, #tpu.memory_space<smem>>
    %188 = vector.broadcast %187 : f32 to vector<2x128xf32>
    %189 = arith.mulf %175, %188 : vector<2x128xf32>
    %190 = arith.addf %186, %189 : vector<2x128xf32>
    %c8_31 = arith.constant 8 : index
    %191 = memref.load %arg3[%c8_31] : memref<12xf32, #tpu.memory_space<smem>>
    %192 = vector.broadcast %191 : f32 to vector<2x128xf32>
    %193 = arith.addf %190, %192 : vector<2x128xf32>
    %c36 = arith.constant 36 : index
    %194 = memref.load %arg2[%c36] : memref<48xf32, #tpu.memory_space<smem>>
    %195 = vector.broadcast %194 : f32 to vector<2x128xf32>
    %196 = arith.mulf %112, %195 : vector<2x128xf32>
    %c37 = arith.constant 37 : index
    %197 = memref.load %arg2[%c37] : memref<48xf32, #tpu.memory_space<smem>>
    %198 = vector.broadcast %197 : f32 to vector<2x128xf32>
    %199 = arith.mulf %133, %198 : vector<2x128xf32>
    %200 = arith.addf %196, %199 : vector<2x128xf32>
    %c38 = arith.constant 38 : index
    %201 = memref.load %arg2[%c38] : memref<48xf32, #tpu.memory_space<smem>>
    %202 = vector.broadcast %201 : f32 to vector<2x128xf32>
    %203 = arith.mulf %154, %202 : vector<2x128xf32>
    %204 = arith.addf %200, %203 : vector<2x128xf32>
    %c39 = arith.constant 39 : index
    %205 = memref.load %arg2[%c39] : memref<48xf32, #tpu.memory_space<smem>>
    %206 = vector.broadcast %205 : f32 to vector<2x128xf32>
    %207 = arith.mulf %175, %206 : vector<2x128xf32>
    %208 = arith.addf %204, %207 : vector<2x128xf32>
    %c9_32 = arith.constant 9 : index
    %209 = memref.load %arg3[%c9_32] : memref<12xf32, #tpu.memory_space<smem>>
    %210 = vector.broadcast %209 : f32 to vector<2x128xf32>
    %211 = arith.addf %208, %210 : vector<2x128xf32>
    %c40 = arith.constant 40 : index
    %212 = memref.load %arg2[%c40] : memref<48xf32, #tpu.memory_space<smem>>
    %213 = vector.broadcast %212 : f32 to vector<2x128xf32>
    %214 = arith.mulf %112, %213 : vector<2x128xf32>
    %c41 = arith.constant 41 : index
    %215 = memref.load %arg2[%c41] : memref<48xf32, #tpu.memory_space<smem>>
    %216 = vector.broadcast %215 : f32 to vector<2x128xf32>
    %217 = arith.mulf %133, %216 : vector<2x128xf32>
    %218 = arith.addf %214, %217 : vector<2x128xf32>
    %c42 = arith.constant 42 : index
    %219 = memref.load %arg2[%c42] : memref<48xf32, #tpu.memory_space<smem>>
    %220 = vector.broadcast %219 : f32 to vector<2x128xf32>
    %221 = arith.mulf %154, %220 : vector<2x128xf32>
    %222 = arith.addf %218, %221 : vector<2x128xf32>
    %c43 = arith.constant 43 : index
    %223 = memref.load %arg2[%c43] : memref<48xf32, #tpu.memory_space<smem>>
    %224 = vector.broadcast %223 : f32 to vector<2x128xf32>
    %225 = arith.mulf %175, %224 : vector<2x128xf32>
    %226 = arith.addf %222, %225 : vector<2x128xf32>
    %c10_33 = arith.constant 10 : index
    %227 = memref.load %arg3[%c10_33] : memref<12xf32, #tpu.memory_space<smem>>
    %228 = vector.broadcast %227 : f32 to vector<2x128xf32>
    %229 = arith.addf %226, %228 : vector<2x128xf32>
    %c44 = arith.constant 44 : index
    %230 = memref.load %arg2[%c44] : memref<48xf32, #tpu.memory_space<smem>>
    %231 = vector.broadcast %230 : f32 to vector<2x128xf32>
    %232 = arith.mulf %112, %231 : vector<2x128xf32>
    %c45 = arith.constant 45 : index
    %233 = memref.load %arg2[%c45] : memref<48xf32, #tpu.memory_space<smem>>
    %234 = vector.broadcast %233 : f32 to vector<2x128xf32>
    %235 = arith.mulf %133, %234 : vector<2x128xf32>
    %236 = arith.addf %232, %235 : vector<2x128xf32>
    %c46 = arith.constant 46 : index
    %237 = memref.load %arg2[%c46] : memref<48xf32, #tpu.memory_space<smem>>
    %238 = vector.broadcast %237 : f32 to vector<2x128xf32>
    %239 = arith.mulf %154, %238 : vector<2x128xf32>
    %240 = arith.addf %236, %239 : vector<2x128xf32>
    %c47 = arith.constant 47 : index
    %241 = memref.load %arg2[%c47] : memref<48xf32, #tpu.memory_space<smem>>
    %242 = vector.broadcast %241 : f32 to vector<2x128xf32>
    %243 = arith.mulf %175, %242 : vector<2x128xf32>
    %244 = arith.addf %240, %243 : vector<2x128xf32>
    %c11_34 = arith.constant 11 : index
    %245 = memref.load %arg3[%c11_34] : memref<12xf32, #tpu.memory_space<smem>>
    %246 = vector.broadcast %245 : f32 to vector<2x128xf32>
    %247 = arith.addf %244, %246 : vector<2x128xf32>
    %c0_35 = arith.constant 0 : index
    %c0_36 = arith.constant 0 : index
    %c0_37 = arith.constant 0 : index
    %c0_38 = arith.constant 0 : index
    %248 = vector.load %arg5[%c0_35, %c0_36, %c0_37, %c0_38] : memref<1x4x2x128xf32, #tpu.memory_space<vmem>>, vector<1x1x2x128xf32>
    %249 = vector.shape_cast %248 : vector<1x1x2x128xf32> to vector<2x128xf32>
    %250 = vector.shape_cast %193 : vector<2x128xf32> to vector<1x1x2x128xf32>
    tpu.vector_store %arg5[%c0_35, %c0_36, %c0_37, %c0_38], %250 {strides = array<i32>} : memref<1x4x2x128xf32, #tpu.memory_space<vmem>>, vector<1x1x2x128xf32>,
    %c0_39 = arith.constant 0 : index
    %c1_40 = arith.constant 1 : index
    %c0_41 = arith.constant 0 : index
    %c0_42 = arith.constant 0 : index
    %251 = vector.load %arg5[%c0_39, %c1_40, %c0_41, %c0_42] : memref<1x4x2x128xf32, #tpu.memory_space<vmem>>, vector<1x1x2x128xf32>
    %252 = vector.shape_cast %251 : vector<1x1x2x128xf32> to vector<2x128xf32>
    %253 = vector.shape_cast %211 : vector<2x128xf32> to vector<1x1x2x128xf32>
    tpu.vector_store %arg5[%c0_39, %c1_40, %c0_41, %c0_42], %253 {strides = array<i32>} : memref<1x4x2x128xf32, #tpu.memory_space<vmem>>, vector<1x1x2x128xf32>,
    %c0_43 = arith.constant 0 : index
    %c2_44 = arith.constant 2 : index
    %c0_45 = arith.constant 0 : index
    %c0_46 = arith.constant 0 : index
    %254 = vector.load %arg5[%c0_43, %c2_44, %c0_45, %c0_46] : memref<1x4x2x128xf32, #tpu.memory_space<vmem>>, vector<1x1x2x128xf32>
    %255 = vector.shape_cast %254 : vector<1x1x2x128xf32> to vector<2x128xf32>
    %256 = vector.shape_cast %229 : vector<2x128xf32> to vector<1x1x2x128xf32>
    tpu.vector_store %arg5[%c0_43, %c2_44, %c0_45, %c0_46], %256 {strides = array<i32>} : memref<1x4x2x128xf32, #tpu.memory_space<vmem>>, vector<1x1x2x128xf32>,
    %c0_47 = arith.constant 0 : index
    %c3_48 = arith.constant 3 : index
    %c0_49 = arith.constant 0 : index
    %c0_50 = arith.constant 0 : index
    %257 = vector.load %arg5[%c0_47, %c3_48, %c0_49, %c0_50] : memref<1x4x2x128xf32, #tpu.memory_space<vmem>>, vector<1x1x2x128xf32>
    %258 = vector.shape_cast %257 : vector<1x1x2x128xf32> to vector<2x128xf32>
    %259 = vector.shape_cast %247 : vector<2x128xf32> to vector<1x1x2x128xf32>
    tpu.vector_store %arg5[%c0_47, %c3_48, %c0_49, %c0_50], %259 {strides = array<i32>} : memref<1x4x2x128xf32, #tpu.memory_space<vmem>>, vector<1x1x2x128xf32>,
    return
  }
  func.func @transform_0(%arg0: i32, %arg1: i32) -> i32 {
    %c0_i32 = arith.constant 0 : i32
    %c0_i32_0 = arith.constant 0 : i32
    return %c0_i32 : i32
  }
  func.func @transform_1(%arg0: i32, %arg1: i32) -> i32 {
    %c0_i32 = arith.constant 0 : i32
    %c0_i32_0 = arith.constant 0 : i32
    return %c0_i32 : i32
  }
  func.func @transform_2(%arg0: i32, %arg1: i32) -> (i32, i32, i32, i32) {
    %c0_i32 = arith.constant 0 : i32
    %c0_i32_0 = arith.constant 0 : i32
    %c0_i32_1 = arith.constant 0 : i32
    return %arg0, %c0_i32, %arg1, %c0_i32_0 : i32, i32, i32, i32
  }
  func.func @transform_3(%arg0: i32, %arg1: i32) -> (i32, i32, i32, i32) {
    %c0_i32 = arith.constant 0 : i32
    %c0_i32_0 = arith.constant 0 : i32
    %c0_i32_1 = arith.constant 0 : i32
    return %arg0, %c0_i32, %arg1, %c0_i32_0 : i32, i32, i32, i32
  }
}

</mosaic_0001>

<llo_original>
// kernel: tpu_custom_call.1
$region0: #{tpu_custom_call.1}
  #allocation0 [shape = 'u32[]', space=smem, size = 0x4, offset = 0x4, fixed_abs, tag = 'smem constant byte address 0x4 - core index']
  #allocation1 [shape = 'u32[144,128]{1,0:T(1,128)}', space=vmem, size = 0x12000, scoped, tag = 'internal scratch']
  %s0 = inlined_call_operand.hbm [shape: f32[48], index: 0, kind: input, shape index: {}]
  %s1 = inlined_call_operand.vmem [shape: f32[12], index: 1, kind: input, shape index: {}]
  %s2 = inlined_call_operand.hbm [shape: f32[2,4,2,128], index: 2, kind: input, shape index: {}]
  %s3 = inlined_call_operand.hbm [shape: f32[2,4,2,128], index: 3, kind: output, shape index: {}]
  %s4 = sld [smem:[#allocation0]]
  $region57: #{tpu_custom_call.1} parent=0
    _
  %s6 = ssub.s32 1, %s4
  %s7 = scalar_select 0, %s6, %s4
  $region1: #{tpu_custom_call.1} parent=0
    #allocation2 [shape = 'u8[512]{0}', space=smem, size = 0x200, scoped, tag = 'input window, operand 0, single buffered']
    #allocation3 [shape = 's32[2]{0}', space=sflag, size = 0x8, scoped, tag = 'scoped memory for tpu_custom_call.1']
    #allocation4 [shape = 's32[2]{0}', space=sflag, size = 0x8, scoped, tag = 'scoped memory for tpu_custom_call.1']
    #allocation5 [shape = 's32[2]{0}', space=sflag, size = 0x8, scoped, tag = 'scoped memory for tpu_custom_call.1']
    #allocation6 [shape = 's32[2]{0}', space=sflag, size = 0x8, scoped, tag = 'scoped memory for tpu_custom_call.1']
    #allocation7 [shape = 'u8[512]{0}', space=smem, size = 0x200, scoped, tag = 'input window, operand 1, single buffered']
    #allocation8 [shape = 'u8[8192]{0}', space=vmem, size = 0x2000, scoped, tag = 'input window, operand 2']
    #allocation9 [shape = 'u8[8192]{0}', space=vmem, size = 0x2000, scoped, tag = 'output window, operand 0']
    %8 = vsyncpa [#allocation5], 0
    %9 = vsyncpa [#allocation6], 0
    %10 = vsyncpa [#allocation3], 0
    %s11 = scalar_lea.sflag [#allocation3], 1
    %12 = vsyncpa %s11, 0
    %13 = vsyncpa [#allocation4], 0
    %s14 = scalar_lea.sflag [#allocation4], 1
    %15 = vsyncpa %s14, 0
    loop: start=0, step=1, limit=4
    $region2: #{tpu_custom_call.1} parent=1 // loop_pre_header
      _
    $region3: #{tpu_custom_call.1} parent=1 // loop_header
      %s17 = sphi 0, %s21
      %p18 = scmp.ge.s32.totalorder %s17, 4
      %s24 = sphi 0, %s36
      %s25 = sphi 0, %s32
      %s26 = sphi 0, %s24
      %s27 = sphi 0, %s25
      %s28 = sphi 0, %s26
      %s29 = sphi 0, %s27
      %s37 = sphi 0, %s37
      %s39 = sphi 0, %s37
      %s40 = sphi 0, %s39
      %s54 = sphi 0, %s40
      %s58 = sphi 0, %s58
      %s60 = sphi 0, %s58
      %s61 = sphi 0, %s60
      %s75 = sphi 0, %s61
      %s83 = sphi 0, %s85
      %s86 = sphi 0, %s83
      %s87 = sphi 0, %s86
      %s103 = sphi 0, %s87
      %s111 = sphi 0, %s113
      %s114 = sphi 0, %s111
      %s115 = sphi 0, %s114
      %s131 = sphi 0, %s115
    $region4: #{tpu_custom_call.1} parent=1 // loop_header_branch
      %20 = sbr.rel (%p18) target = $region8
    $region5: #{tpu_custom_call.1} parent=1 // loop_body
      %s22 = ssub.s32 %s17, 1
      %s23 = ssub.s32 %s17, 2
      %s30 = sadd.s32 1, %s25
      %p31 = scmp.ge.s32.totalorder %s30, 1
      %s32 = scalar_select %p31, 0, %s30
      %s33 = sadd.s32 1, %s24
      %s34 = scalar_select %p31, %s33, %s24
      %p35 = scmp.ge.s32.totalorder %s34, 2
      %s36 = scalar_select %p35, 0, %s34
      %s38 = sadd.s32 %s37, 1
      %p41 = scmp.eq.s32.totalorder %s17, 1
      %p42 = scmp.ne.s32.totalorder %s37, %s39
      %p43 = scmp.eq.s32.totalorder %s17, 0
      %p44 = por %p42, %p43
      %p45 = scmp.ne.s32.totalorder %s37, %s39
      %p46 = scmp.eq.s32.totalorder %s22, 1
      %p47 = por %p45, %p46
      %p48 = scmp.ne.s32.totalorder %s39, %s40
      %p49 = scmp.eq.s32.totalorder %s22, 0
      %p50 = por %p48, %p49
      %p51 = scmp.ne.s32.totalorder %s39, %s40
      %p52 = scmp.eq.s32.totalorder %s23, 1
      %p53 = por %p51, %p52
      %p55 = scmp.ne.s32.totalorder %s40, %s54
      %p56 = scmp.eq.s32.totalorder %s23, 0
      %p57 = por %p55, %p56
      %s59 = sadd.s32 %s58, 1
      %p62 = scmp.eq.s32.totalorder %s17, 1
      %p63 = scmp.ne.s32.totalorder %s58, %s60
      %p64 = scmp.eq.s32.totalorder %s17, 0
      %p65 = por %p63, %p64
      %p66 = scmp.ne.s32.totalorder %s58, %s60
      %p67 = scmp.eq.s32.totalorder %s22, 1
      %p68 = por %p66, %p67
      %p69 = scmp.ne.s32.totalorder %s60, %s61
      %p70 = scmp.eq.s32.totalorder %s22, 0
      %p71 = por %p69, %p70
      %p72 = scmp.ne.s32.totalorder %s60, %s61
      %p73 = scmp.eq.s32.totalorder %s23, 1
      %p74 = por %p72, %p73
      %p76 = scmp.ne.s32.totalorder %s61, %s75
      %p77 = scmp.eq.s32.totalorder %s23, 0
      %p78 = por %p76, %p77
      %s79 = ssub.s32 %s24, %s36
      %s80 = ssub.s32 %s25, %s32
      %s81 = sor.u32 %s79, %s80
      %p82 = scmp.eq.s32.totalorder %s81, 0
      %s84 = sadd.s32 %s83, 1
      %s85 = scalar_select %p82, %s83, %s84
      %p88 = pneg %p82
      %p89 = scmp.eq.s32.totalorder %s17, 1
      %p90 = por %p88, %p89
      %p91 = scmp.ne.s32.totalorder %s83, %s86
      %p92 = scmp.eq.s32.totalorder %s17, 0
      %p93 = por %p91, %p92
      %p94 = scmp.ne.s32.totalorder %s83, %s86
      %p95 = scmp.eq.s32.totalorder %s22, 1
      %p96 = por %p94, %p95
      %p97 = scmp.ne.s32.totalorder %s86, %s87
      %p98 = scmp.eq.s32.totalorder %s22, 0
      %p99 = por %p97, %p98
      %p100 = scmp.ne.s32.totalorder %s86, %s87
      %p101 = scmp.eq.s32.totalorder %s23, 1
      %p102 = por %p100, %p101
      %p104 = scmp.ne.s32.totalorder %s87, %s103
      %p105 = scmp.eq.s32.totalorder %s23, 0
      %p106 = por %p104, %p105
      %s107 = ssub.s32 %s24, %s36
      %s108 = ssub.s32 %s25, %s32
      %s109 = sor.u32 %s107, %s108
      %p110 = scmp.eq.s32.totalorder %s109, 0
      %s112 = sadd.s32 %s111, 1
      %s113 = scalar_select %p110, %s111, %s112
      %p116 = pneg %p110
      %p117 = scmp.eq.s32.totalorder %s17, 1
      %p118 = por %p116, %p117
      %p119 = scmp.ne.s32.totalorder %s111, %s114
      %p120 = scmp.eq.s32.totalorder %s17, 0
      %p121 = por %p119, %p120
      %p122 = scmp.ne.s32.totalorder %s111, %s114
      %p123 = scmp.eq.s32.totalorder %s22, 1
      %p124 = por %p122, %p123
      %p125 = scmp.ne.s32.totalorder %s114, %s115
      %p126 = scmp.eq.s32.totalorder %s22, 0
      %p127 = por %p125, %p126
      %p128 = scmp.ne.s32.totalorder %s114, %s115
      %p129 = scmp.eq.s32.totalorder %s23, 1
      %p130 = por %p128, %p129
      %p132 = scmp.ne.s32.totalorder %s115, %s131
      %p133 = scmp.eq.s32.totalorder %s23, 0
      %p134 = por %p132, %p133
      %p135 = scmp.le.s32.totalorder 1, %s17
      %p136 = scmp.lt.s32.totalorder %s17, 3
      %p137 = pnand %p135, %p136
      %p138 = pneg %p137
      // Predicated region
      $region9: #{tpu_custom_call.1} parent=5 // pred_check
        _
      $region10: #{tpu_custom_call.1} parent=5 // pred_check_branch
        %140 = sbr.rel (%p137) target = $region12
      $region11: #{tpu_custom_call.1} parent=5 // pred_region
        %s141 = ssub.s32 %s17, 1
        // Predicated region
        $region13: #{tpu_custom_call.1} parent=11 // pred_check
          %p142 = pneg %p50
        $region14: #{tpu_custom_call.1} parent=11 // pred_check_branch
          %144 = sbr.rel (%p142) target = $region16
        $region15: #{tpu_custom_call.1} parent=11 // pred_region
          %s146 = ssub.s32 16, 16
          %147 = vsyncadd [#allocation5], %s146
          %150 = dma.hbm_to_smem %s0, 16, [#allocation2], [#allocation5]
        $region16: #{tpu_custom_call.1} parent=11 // pred_fallthru
          _
        // Predicated region
        $region17: #{tpu_custom_call.1} parent=11 // pred_check
          %p151 = pneg %p71
        $region18: #{tpu_custom_call.1} parent=11 // pred_check_branch
          %153 = sbr.rel (%p151) target = $region20
        $region19: #{tpu_custom_call.1} parent=11 // pred_region
          %s155 = ssub.s32 16, 16
          %156 = vsyncadd [#allocation6], %s155
          %s158 = sshll.u32 %s1, 4
          %s159 = int_to_ptr.vmem [resolvable:$true] %s158
          %161 = dma.vmem_to_smem %s159, 16, [#allocation7], [#allocation6]
        $region20: #{tpu_custom_call.1} parent=11 // pred_fallthru
          _
      $region12: #{tpu_custom_call.1} parent=5 // pred_fallthru
        _
      %p162 = scmp.lt.s32.totalorder %s17, 2
      // Predicated region
      $region21: #{tpu_custom_call.1} parent=5 // pred_check
        %p163 = pneg %p162
      $region22: #{tpu_custom_call.1} parent=5 // pred_check_branch
        %165 = sbr.rel (%p163) target = $region24
      $region23: #{tpu_custom_call.1} parent=5 // pred_region
        // Predicated region
        $region25: #{tpu_custom_call.1} parent=23 // pred_check
          %p166 = pneg %p93
        $region26: #{tpu_custom_call.1} parent=23 // pred_check_branch
          %168 = sbr.rel (%p166) target = $region28
        $region27: #{tpu_custom_call.1} parent=23 // pred_region
          %s169 = sand.u32 %s83, 1
          %s170 = scalar_lea.sflag [#allocation3], %s169
          %s171 = sand.u32 %s83, 1
          %s172 = smul.addr %s171, 8
          %s173 = scalar_lea.vmem [#allocation8], %s172
          %s175 = ssub.s32 128, 128
          %176 = vsyncadd %s170, %s175
          %s177 = smul.addr %s24, 4
          %s178 = sadd.s32 %s25, %s177
          %s179 = smul.addr %s178, 32
          %s180 = scalar_lea.hbm %s2, %s179
          %s181 = sshll.u32 %s173, 4
          %s182 = int_to_ptr.vmem [resolvable:$true] %s181
          %187 = dma.hbm_to_vmem [thread:$0]  %s180, 128, %s182, %s170, 32, 32, 2
        $region28: #{tpu_custom_call.1} parent=23 // pred_fallthru
          _
      $region24: #{tpu_custom_call.1} parent=5 // pred_fallthru
        _
      %p188 = scmp.le.s32.totalorder 1, %s17
      %p189 = scmp.lt.s32.totalorder %s17, 3
      %p190 = pnand %p188, %p189
      %p191 = pneg %p190
      // Predicated region
      $region29: #{tpu_custom_call.1} parent=5 // pred_check
        _
      $region30: #{tpu_custom_call.1} parent=5 // pred_check_branch
        %193 = sbr.rel (%p190) target = $region32
      $region31: #{tpu_custom_call.1} parent=5 // pred_region
        %s194 = ssub.s32 %s17, 1
        // Predicated region
        $region33: #{tpu_custom_call.1} parent=31 // pred_check
          %p195 = pneg %p50
        $region34: #{tpu_custom_call.1} parent=31 // pred_check_branch
          %197 = sbr.rel (%p195) target = $region36
        $region35: #{tpu_custom_call.1} parent=31 // pred_region
          %198 = dma.done [#allocation5], 16
        $region36: #{tpu_custom_call.1} parent=31 // pred_fallthru
          _
        // Predicated region
        $region37: #{tpu_custom_call.1} parent=31 // pred_check
          %p199 = pneg %p71
        $region38: #{tpu_custom_call.1} parent=31 // pred_check_branch
          %201 = sbr.rel (%p199) target = $region40
        $region39: #{tpu_custom_call.1} parent=31 // pred_region
          %202 = dma.done [#allocation6], 16
        $region40: #{tpu_custom_call.1} parent=31 // pred_fallthru
          _
        %s203 = sand.u32 %s86, 1
        %s204 = scalar_lea.sflag [#allocation3], %s203
        %s205 = sand.u32 %s86, 1
        %s206 = smul.addr %s205, 8
        %s207 = scalar_lea.vmem [#allocation8], %s206
        // Predicated region
        $region41: #{tpu_custom_call.1} parent=31 // pred_check
          %p208 = pneg %p99
        $region42: #{tpu_custom_call.1} parent=31 // pred_check_branch
          %210 = sbr.rel (%p208) target = $region44
        $region43: #{tpu_custom_call.1} parent=31 // pred_region
          %211 = dma.done %s204, 128
        $region44: #{tpu_custom_call.1} parent=31 // pred_fallthru
          _
        %212 = sfence
        %p213 = pneg %p50
        %p214 = pneg %p47
        %p215 = pneg %p71
        %p216 = pneg %p68
        %s217 = sand.u32 %s86, 1
        %s218 = scalar_lea.sflag [#allocation3], %s217
        %s219 = sand.u32 %s86, 1
        %s220 = smul.addr %s219, 8
        %s221 = scalar_lea.vmem [#allocation8], %s220
        %p222 = pneg %p99
        %p223 = pneg %p96
        %p224 = pneg %p127
        %p225 = pneg %p124
        %s226 = sand.u32 %s114, 1
        %s227 = scalar_lea.sflag [#allocation4], %s226
        %s228 = sand.u32 %s114, 1
        %s229 = smul.addr %s228, 8
        %s230 = scalar_lea.vmem [#allocation9], %s229
        %v231 = vld [vmem:[%s207] sm:$0x3]
        %s232 = scalar_lea.vmem %s207, 2 [#allocation8]
        %v233 = vld [vmem:[%s232] sm:$0x3]
        %s234 = scalar_lea.vmem %s207, 4 [#allocation8]
        %v235 = vld [vmem:[%s234] sm:$0x3]
        %s236 = scalar_lea.vmem %s207, 6 [#allocation8]
        %v237 = vld [vmem:[%s236] sm:$0x3]
        %s238 = sld [smem:[#allocation2]]
        %v239 = vstv %s238
        %v240 = vmul.f32 %v231, %v239
        %s241 = sld [smem:[#allocation2 + $0x1]]
        %v242 = vstv %s241
        %v243 = vmul.f32 %v233, %v242
        %v244 = vadd.f32 %v240, %v243
        %s245 = sld [smem:[#allocation2 + $0x2]]
        %v246 = vstv %s245
        %v247 = vmul.f32 %v235, %v246
        %v248 = vadd.f32 %v244, %v247
        %s249 = sld [smem:[#allocation2 + $0x3]]
        %v250 = vstv %s249
        %v251 = vmul.f32 %v237, %v250
        %v252 = vadd.f32 %v248, %v251
        %s253 = sld [smem:[#allocation7]]
        %v254 = vstv %s253
        %v255 = vadd.f32 %v252, %v254
        %v256 = vmul.f32 %v255, 0.01
        %v257 = vmax.f32 %v255, %v256
        %s258 = sld [smem:[#allocation2 + $0x4]]
        %v259 = vstv %s258
        %v260 = vmul.f32 %v231, %v259
        %s261 = sld [smem:[#allocation2 + $0x5]]
        %v262 = vstv %s261
        %v263 = vmul.f32 %v233, %v262
        %v264 = vadd.f32 %v260, %v263
        %s265 = sld [smem:[#allocation2 + $0x6]]
        %v266 = vstv %s265
        %v267 = vmul.f32 %v235, %v266
        %v268 = vadd.f32 %v264, %v267
        %s269 = sld [smem:[#allocation2 + $0x7]]
        %v270 = vstv %s269
        %v271 = vmul.f32 %v237, %v270
        %v272 = vadd.f32 %v268, %v271
        %s273 = sld [smem:[#allocation7 + $0x1]]
        %v274 = vstv %s273
        %v275 = vadd.f32 %v272, %v274
        %v276 = vmul.f32 %v275, 0.01
        %v277 = vmax.f32 %v275, %v276
        %s278 = sld [smem:[#allocation2 + $0x8]]
        %v279 = vstv %s278
        %v280 = vmul.f32 %v231, %v279
        %s281 = sld [smem:[#allocation2 + $0x9]]
        %v282 = vstv %s281
        %v283 = vmul.f32 %v233, %v282
        %v284 = vadd.f32 %v280, %v283
        %s285 = sld [smem:[#allocation2 + $0xa]]
        %v286 = vstv %s285
        %v287 = vmul.f32 %v235, %v286
        %v288 = vadd.f32 %v284, %v287
        %s289 = sld [smem:[#allocation2 + $0xb]]
        %v290 = vstv %s289
        %v291 = vmul.f32 %v237, %v290
        %v292 = vadd.f32 %v288, %v291
        %s293 = sld [smem:[#allocation7 + $0x2]]
        %v294 = vstv %s293
        %v295 = vadd.f32 %v292, %v294
        %v296 = vmul.f32 %v295, 0.01
        %v297 = vmax.f32 %v295, %v296
        %s298 = sld [smem:[#allocation2 + $0xc]]
        %v299 = vstv %s298
        %v300 = vmul.f32 %v231, %v299
        %s301 = sld [smem:[#allocation2 + $0xd]]
        %v302 = vstv %s301
        %v303 = vmul.f32 %v233, %v302
        %v304 = vadd.f32 %v300, %v303
        %s305 = sld [smem:[#allocation2 + $0xe]]
        %v306 = vstv %s305
        %v307 = vmul.f32 %v235, %v306
        %v308 = vadd.f32 %v304, %v307
        %s309 = sld [smem:[#allocation2 + $0xf]]
        %v310 = vstv %s309
        %v311 = vmul.f32 %v237, %v310
        %v312 = vadd.f32 %v308, %v311
        %s313 = sld [smem:[#allocation7 + $0x3]]
        %v314 = vstv %s313
        %v315 = vadd.f32 %v312, %v314
        %v316 = vmul.f32 %v315, 0.01
        %v317 = vmax.f32 %v315, %v316
        %s318 = sld [smem:[#allocation2 + $0x10]]
        %v319 = vstv %s318
        %v320 = vmul.f32 %v257, %v319
        %s321 = sld [smem:[#allocation2 + $0x11]]
        %v322 = vstv %s321
        %v323 = vmul.f32 %v277, %v322
        %v324 = vadd.f32 %v320, %v323
        %s325 = sld [smem:[#allocation2 + $0x12]]
        %v326 = vstv %s325
        %v327 = vmul.f32 %v297, %v326
        %v328 = vadd.f32 %v324, %v327
        %s329 = sld [smem:[#allocation2 + $0x13]]
        %v330 = vstv %s329
        %v331 = vmul.f32 %v317, %v330
        %v332 = vadd.f32 %v328, %v331
        %s333 = sld [smem:[#allocation7 + $0x4]]
        %v334 = vstv %s333
        %v335 = vadd.f32 %v332, %v334
        %v336 = vmul.f32 %v335, 0.01
        %v337 = vmax.f32 %v335, %v336
        %s338 = sld [smem:[#allocation2 + $0x14]]
        %v339 = vstv %s338
        %v340 = vmul.f32 %v257, %v339
        %s341 = sld [smem:[#allocation2 + $0x15]]
        %v342 = vstv %s341
        %v343 = vmul.f32 %v277, %v342
        %v344 = vadd.f32 %v340, %v343
        %s345 = sld [smem:[#allocation2 + $0x16]]
        %v346 = vstv %s345
        %v347 = vmul.f32 %v297, %v346
        %v348 = vadd.f32 %v344, %v347
        %s349 = sld [smem:[#allocation2 + $0x17]]
        %v350 = vstv %s349
        %v351 = vmul.f32 %v317, %v350
        %v352 = vadd.f32 %v348, %v351
        %s353 = sld [smem:[#allocation7 + $0x5]]
        %v354 = vstv %s353
        %v355 = vadd.f32 %v352, %v354
        %v356 = vmul.f32 %v355, 0.01
        %v357 = vmax.f32 %v355, %v356
        %s358 = sld [smem:[#allocation2 + $0x18]]
        %v359 = vstv %s358
        %v360 = vmul.f32 %v257, %v359
        %s361 = sld [smem:[#allocation2 + $0x19]]
        %v362 = vstv %s361
        %v363 = vmul.f32 %v277, %v362
        %v364 = vadd.f32 %v360, %v363
        %s365 = sld [smem:[#allocation2 + $0x1a]]
        %v366 = vstv %s365
        %v367 = vmul.f32 %v297, %v366
        %v368 = vadd.f32 %v364, %v367
        %s369 = sld [smem:[#allocation2 + $0x1b]]
        %v370 = vstv %s369
        %v371 = vmul.f32 %v317, %v370
        %v372 = vadd.f32 %v368, %v371
        %s373 = sld [smem:[#allocation7 + $0x6]]
        %v374 = vstv %s373
        %v375 = vadd.f32 %v372, %v374
        %v376 = vmul.f32 %v375, 0.01
        %v377 = vmax.f32 %v375, %v376
        %s378 = sld [smem:[#allocation2 + $0x1c]]
        %v379 = vstv %s378
        %v380 = vmul.f32 %v257, %v379
        %s381 = sld [smem:[#allocation2 + $0x1d]]
        %v382 = vstv %s381
        %v383 = vmul.f32 %v277, %v382
        %v384 = vadd.f32 %v380, %v383
        %s385 = sld [smem:[#allocation2 + $0x1e]]
        %v386 = vstv %s385
        %v387 = vmul.f32 %v297, %v386
        %v388 = vadd.f32 %v384, %v387
        %s389 = sld [smem:[#allocation2 + $0x1f]]
        %v390 = vstv %s389
        %v391 = vmul.f32 %v317, %v390
        %v392 = vadd.f32 %v388, %v391
        %s393 = sld [smem:[#allocation7 + $0x7]]
        %v394 = vstv %s393
        %v395 = vadd.f32 %v392, %v394
        %v396 = vmul.f32 %v395, 0.01
        %v397 = vmax.f32 %v395, %v396
        %s398 = sld [smem:[#allocation2 + $0x20]]
        %v399 = vstv %s398
        %v400 = vmul.f32 %v337, %v399
        %s401 = sld [smem:[#allocation2 + $0x21]]
        %v402 = vstv %s401
        %v403 = vmul.f32 %v357, %v402
        %v404 = vadd.f32 %v400, %v403
        %s405 = sld [smem:[#allocation2 + $0x22]]
        %v406 = vstv %s405
        %v407 = vmul.f32 %v377, %v406
        %v408 = vadd.f32 %v404, %v407
        %s409 = sld [smem:[#allocation2 + $0x23]]
        %v410 = vstv %s409
        %v411 = vmul.f32 %v397, %v410
        %v412 = vadd.f32 %v408, %v411
        %s413 = sld [smem:[#allocation7 + $0x8]]
        %v414 = vstv %s413
        %v415 = vadd.f32 %v412, %v414
        %s416 = sld [smem:[#allocation2 + $0x24]]
        %v417 = vstv %s416
        %v418 = vmul.f32 %v337, %v417
        %s419 = sld [smem:[#allocation2 + $0x25]]
        %v420 = vstv %s419
        %v421 = vmul.f32 %v357, %v420
        %v422 = vadd.f32 %v418, %v421
        %s423 = sld [smem:[#allocation2 + $0x26]]
        %v424 = vstv %s423
        %v425 = vmul.f32 %v377, %v424
        %v426 = vadd.f32 %v422, %v425
        %s427 = sld [smem:[#allocation2 + $0x27]]
        %v428 = vstv %s427
        %v429 = vmul.f32 %v397, %v428
        %v430 = vadd.f32 %v426, %v429
        %s431 = sld [smem:[#allocation7 + $0x9]]
        %v432 = vstv %s431
        %v433 = vadd.f32 %v430, %v432
        %s434 = sld [smem:[#allocation2 + $0x28]]
        %v435 = vstv %s434
        %v436 = vmul.f32 %v337, %v435
        %s437 = sld [smem:[#allocation2 + $0x29]]
        %v438 = vstv %s437
        %v439 = vmul.f32 %v357, %v438
        %v440 = vadd.f32 %v436, %v439
        %s441 = sld [smem:[#allocation2 + $0x2a]]
        %v442 = vstv %s441
        %v443 = vmul.f32 %v377, %v442
        %v444 = vadd.f32 %v440, %v443
        %s445 = sld [smem:[#allocation2 + $0x2b]]
        %v446 = vstv %s445
        %v447 = vmul.f32 %v397, %v446
        %v448 = vadd.f32 %v444, %v447
        %s449 = sld [smem:[#allocation7 + $0xa]]
        %v450 = vstv %s449
        %v451 = vadd.f32 %v448, %v450
        %s452 = sld [smem:[#allocation2 + $0x2c]]
        %v453 = vstv %s452
        %v454 = vmul.f32 %v337, %v453
        %s455 = sld [smem:[#allocation2 + $0x2d]]
        %v456 = vstv %s455
        %v457 = vmul.f32 %v357, %v456
        %v458 = vadd.f32 %v454, %v457
        %s459 = sld [smem:[#allocation2 + $0x2e]]
        %v460 = vstv %s459
        %v461 = vmul.f32 %v377, %v460
        %v462 = vadd.f32 %v458, %v461
        %s463 = sld [smem:[#allocation2 + $0x2f]]
        %v464 = vstv %s463
        %v465 = vmul.f32 %v397, %v464
        %v466 = vadd.f32 %v462, %v465
        %s467 = sld [smem:[#allocation7 + $0xb]]
        %v468 = vstv %s467
        %v469 = vadd.f32 %v466, %v468
        %470 = vst [vmem:[%s230] sm:$0x3] %v415
        %s471 = scalar_lea.vmem %s230, 2 [#allocation9]
        %472 = vst [vmem:[%s471] sm:$0x3] %v433
        %s473 = scalar_lea.vmem %s230, 4 [#allocation9]
        %474 = vst [vmem:[%s473] sm:$0x3] %v451
        %s475 = scalar_lea.vmem %s230, 6 [#allocation9]
        %476 = vst [vmem:[%s475] sm:$0x3] %v469
        %s477 = sand.u32 %s114, 1
        %s478 = scalar_lea.sflag [#allocation4], %s477
        %s479 = sand.u32 %s114, 1
        %s480 = smul.addr %s479, 8
        %s481 = scalar_lea.vmem [#allocation9], %s480
        // Predicated region
        $region45: #{tpu_custom_call.1} parent=31 // pred_check
          %p482 = pneg %p124
        $region46: #{tpu_custom_call.1} parent=31 // pred_check_branch
          %484 = sbr.rel (%p482) target = $region48
        $region47: #{tpu_custom_call.1} parent=31 // pred_region
          %s486 = ssub.s32 128, 128
          %487 = vsyncadd %s478, %s486
          %s488 = smul.addr %s26, 4
          %s489 = sadd.s32 %s27, %s488
          %s490 = smul.addr %s489, 32
          %s491 = scalar_lea.hbm %s3, %s490
          %s492 = sshll.u32 %s481, 4
          %s493 = int_to_ptr.vmem [resolvable:$true] %s492
          %498 = dma.vmem_to_hbm [thread:$0]  %s493, 128, %s491, %s478, 32, 32, 2
        $region48: #{tpu_custom_call.1} parent=31 // pred_fallthru
          _
      $region32: #{tpu_custom_call.1} parent=5 // pred_fallthru
        _
      %p499 = scmp.le.s32.totalorder 2, %s17
      // Predicated region
      $region49: #{tpu_custom_call.1} parent=5 // pred_check
        %p500 = pneg %p499
      $region50: #{tpu_custom_call.1} parent=5 // pred_check_branch
        %502 = sbr.rel (%p500) target = $region52
      $region51: #{tpu_custom_call.1} parent=5 // pred_region
        %s503 = ssub.s32 %s17, 2
        // Predicated region
        $region53: #{tpu_custom_call.1} parent=51 // pred_check
          %p504 = pneg %p130
        $region54: #{tpu_custom_call.1} parent=51 // pred_check_branch
          %506 = sbr.rel (%p504) target = $region56
        $region55: #{tpu_custom_call.1} parent=51 // pred_region
          %s507 = sand.u32 %s115, 1
          %s508 = scalar_lea.sflag [#allocation4], %s507
          %s509 = sand.u32 %s115, 1
          %s510 = smul.addr %s509, 8
          %s511 = scalar_lea.vmem [#allocation9], %s510
          %512 = dma.done %s508, 128
        $region56: #{tpu_custom_call.1} parent=51 // pred_fallthru
          _
      $region52: #{tpu_custom_call.1} parent=5 // pred_fallthru
        _
    $region6: #{tpu_custom_call.1} parent=1 // loop_footer
      %s21 = sadd.s32 1, %s17
    $region7: #{tpu_custom_call.1} parent=1 // loop_footer_branch
      %16 = sbr.rel target = $region3
    $region8: #{tpu_custom_call.1} parent=1 // loop_exit
      _
    %513 = vsyncpa [#allocation3], 1
    %s514 = scalar_lea.sflag [#allocation3], 1
    %515 = vsyncpa %s514, 1
    %516 = vsyncpa [#allocation4], 1
    %s517 = scalar_lea.sflag [#allocation4], 1
    %518 = vsyncpa %s517, 1
    %519 = vsyncpa [#allocation5], 1
    %s520 = scalar_lea.sflag [#allocation5], 1
    %521 = vsyncpa %s520, 1
    %522 = vsyncpa [#allocation6], 1
    %s523 = scalar_lea.sflag [#allocation6], 1
    %524 = vsyncpa %s523, 1

</llo_original>
